<compile_context>
chip_gen: v5e
topology: v5e:2x2
jax: 0.10.0
libtpu: 0.0.40
codegen_flags: <defaults>
</compile_context>

<pallas_src>
import functools

import jax
import jax.numpy as jnp
from jax import lax
from jax.experimental import pallas as pl
from jax.experimental.pallas import tpu as pltpu


def _fold_bn(gamma, beta, mean, var, eps=1e-5):
    scale = gamma / jnp.sqrt(var + eps)
    bias = beta - mean * scale
    return scale, bias


def _banded_weights(w_hwio, scale, W, d):
    """Fold the BN scale into the conv weights and bake the three kw (column)
    taps + column zero-padding into one block-banded (3*W*Cin, W*Cout) bf16
    matrix, so the kernel only needs the three kh row shifts."""
    _, _, Cin, Cout = w_hwio.shape
    wf = w_hwio.astype(jnp.float32) * scale[None, None, None, :]      # (3,3,Ci,Co)
    cols = jnp.arange(W)
    # band[kw, w, v] == 1 iff input column w feeds output column v via tap kw
    # (w == v + (kw-1)*d); out-of-range columns simply have no band entry,
    # which implements the zero padding exactly.
    band = (cols[None, :, None] ==
            cols[None, None, :] + (jnp.arange(3)[:, None, None] - 1) * d
            ).astype(jnp.float32)                                      # (3, W, W)
    m = jnp.einsum('kwv,hkio->hwivo', band, wf,
                   precision=lax.Precision.HIGHEST)                    # (3,W,Ci,W,Co)
    return m.reshape(3 * W * Cin, W * Cout).astype(jnp.bfloat16)


def _make_fused_basic_block_kernel(H, W, C, d):
    """Fused BasicBlock for one image in lane-flat (H, W*C) layout:
         h   = relu(conv3x3(x) + b1)    # BN1 scale folded into w1
         out = conv3x3(h) + b2 + x      # BN2 scale folded into w2, no final ReLU
       conv3x3: stride 1, zero padding p == dilation d (same-size output)."""
    L = W * C
    p = d
    RT = ((p + 15) // 16) * 16   # 16-row-aligned interior start (bf16 packing)
    RB = ((p + 15) // 16) * 16   # bottom halo group (aligned full-group zeroing)
    buf_rows = RT + H + RB

    def kernel(x_ref, w1_ref, b1_ref, w2_ref, b2_ref, o_ref, buf_ref):
        # Zero the halo groups UNCONDITIONALLY each grid step: scratch is
        # per-core, so gating the init on program_id(0)==0 is wrong under
        # megacore/"parallel" sharding. Cost: two aligned vreg-wide stores.
        buf_ref[0:RT, :] = jnp.zeros((RT, L), dtype=buf_ref.dtype)
        buf_ref[RT + H:RT + H + RB, :] = jnp.zeros((RB, L), dtype=buf_ref.dtype)

        def conv_bn(w_ref, b_ref):
            # "im2col" = 3 row-shifted, lane-aligned reads concatenated along
            # lanes; the kw taps / column padding live in the banded weight
            # matrix, so this is one MXU matmul with K = 3*L, N = L (>=128).
            patches = jnp.concatenate(
                [buf_ref[RT - p + kh * d: RT - p + kh * d + H, :]
                 for kh in range(3)], axis=-1)                     # (H, 3L) bf16
            return jnp.dot(patches, w_ref[...],
                           preferred_element_type=jnp.float32) + b_ref[...]

        # ---- conv1 + BN1 + ReLU (intermediate h never leaves VMEM) ----
        buf_ref[RT:RT + H, :] = x_ref[0]                           # aligned store
        h = jnp.maximum(conv_bn(w1_ref, b1_ref), 0.0)              # (H, L) f32

        # ---- conv2 + BN2 + residual (scratch reused for h; x re-read from the
        #      still-resident input block to keep its live range short) ----
        buf_ref[RT:RT + H, :] = h.astype(buf_ref.dtype)
        out = conv_bn(w2_ref, b2_ref) + x_ref[0].astype(jnp.float32)
        o_ref[0] = out.astype(o_ref.dtype)                         # no final ReLU

    return kernel, buf_rows


def basic_block_forward(x_nchw, params, *, pad=1, dilation=1):
    """BasicBlock forward (stride=1, downsample=None), PyTorch NCHW in/out."""
    N, C, H, W = x_nchw.shape
    Cout = params["w1"].shape[-1]
    if Cout != C:
        raise NotImplementedError("downsample=None requires inplanes == planes")
    p = dilation if dilation > 1 else pad
    if p != dilation:
        raise NotImplementedError("residual add needs same-size conv (pad == dilation)")
    # TODO(synk): stride > 1 with a downsample submodule is not implemented.

    L = W * C
    # NCHW -> lane-flat (N, H, W*C) with channels fastest; bf16 across HBM.
    x = jnp.transpose(x_nchw, (0, 2, 3, 1)).reshape(N, H, L).astype(jnp.bfloat16)

    s1, b1 = _fold_bn(params["bn1_gamma"], params["bn1_beta"],
                      params["bn1_mean"], params["bn1_var"])
    s2, b2 = _fold_bn(params["bn2_gamma"], params["bn2_beta"],
                      params["bn2_mean"], params["bn2_var"])

    w1 = _banded_weights(params["w1"], s1, W, dilation)
    w2 = _banded_weights(params["w2"], s2, W, dilation)
    # Bias pre-tiled over columns: one (1, W*C) f32 row, added once per conv.
    b1f = jnp.tile(b1, W).reshape(1, L).astype(jnp.float32)
    b2f = jnp.tile(b2, W).reshape(1, L).astype(jnp.float32)

    kernel, buf_rows = _make_fused_basic_block_kernel(H, W, C, dilation)

    out = pl.pallas_call(
        kernel,
        out_shape=jax.ShapeDtypeStruct((N, H, L), jnp.bfloat16),   # bf16 writeback
        grid_spec=pltpu.PrefetchScalarGridSpec(
            num_scalar_prefetch=0,
            # TODO(synk): for real ResNet shapes tile H into row blocks (with a
            # 2*dilation-row halo) and tile output channels to >=128/256 so VMEM
            # stays bounded (v7x: 64 MiB) and the pipeline / both v7x TCs get
            # many grid steps; the banded-weight trick then applies per W-tile.
            grid=(N,),
            in_specs=[
                pl.BlockSpec((1, H, L), lambda n: (n, 0, 0)),      # x (+ residual)
                pl.BlockSpec((3 * L, L), lambda n: (0, 0)),        # banded w1 (BN folded)
                pl.BlockSpec((1, L), lambda n: (0, 0)),            # b1 (tiled over W)
                pl.BlockSpec((3 * L, L), lambda n: (0, 0)),        # banded w2 (BN folded)
                pl.BlockSpec((1, L), lambda n: (0, 0)),            # b2 (tiled over W)
            ],
            out_specs=pl.BlockSpec((1, H, L), lambda n: (n, 0, 0)),
            scratch_shapes=[
                pltpu.VMEM((buf_rows, L), jnp.bfloat16),           # bf16 row-halo buffer
            ],
        ),
        compiler_params=pltpu.CompilerParams(
            dimension_semantics=("parallel",)),
    )(x, w1, b1f, w2, b2f)

    out = out.astype(jnp.float32).reshape(N, H, W, C)   # bf16 writeback -> f32 NHWC
    return jnp.transpose(out, (0, 3, 1, 2))             # NHWC -> NCHW


def _reference(x_nchw, params, *, pad=1, dilation=1):
    """Pure-JAX f32 reference using lax.conv_general_dilated (NHWC)."""
    x = jnp.transpose(x_nchw, (0, 2, 3, 1))
    p = dilation if dilation > 1 else pad

    def conv_bn(inp, w, gamma, beta, mean, var, relu):
        y = lax.conv_general_dilated(
            inp, w, window_strides=(1, 1), padding=[(p, p), (p, p)],
            rhs_dilation=(dilation, dilation),
            dimension_numbers=("NHWC", "HWIO", "NHWC"),
            precision=lax.Precision.HIGHEST)
        s, b = _fold_bn(gamma, beta, mean, var)
        y = y * s + b
        return jnp.maximum(y, 0.0) if relu else y

    h = conv_bn(x, params["w1"], params["bn1_gamma"], params["bn1_beta"],
                params["bn1_mean"], params["bn1_var"], True)
    out = conv_bn(h, params["w2"], params["bn2_gamma"], params["bn2_beta"],
                  params["bn2_mean"], params["bn2_var"], False)
    out = out + x                                  # no final ReLU in this module
    return jnp.transpose(out, (0, 3, 1, 2))


if __name__ == "__main__":
    # Small shapes: batch=2, inplanes=planes=8, spatial=16x16 (so W*C = 128
    # lanes), stride=1, pad=1, dilation=1, downsample=None.
    N, C, H, W = 2, 8, 16, 16
    key = jax.random.PRNGKey(0)
    ks = jax.random.split(key, 10)

    x = jax.random.normal(ks[0], (N, C, H, W), jnp.float32)

    params = {
        # conv weights stored HWIO (3, 3, Cin, Cout)
        "w1": 0.1 * jax.random.normal(ks[1], (3, 3, C, C), jnp.float32),
        "w2": 0.1 * jax.random.normal(ks[2], (3, 3, C, C), jnp.float32),
        "bn1_gamma": 1.0 + 0.1 * jax.random.normal(ks[3], (C,), jnp.float32),
        "bn1_beta": 0.1 * jax.random.normal(ks[4], (C,), jnp.float32),
        "bn1_mean": 0.05 * jax.random.normal(ks[5], (C,), jnp.float32),
        "bn1_var": jnp.abs(1.0 + 0.1 * jax.random.normal(ks[6], (C,), jnp.float32)),
        "bn2_gamma": 1.0 + 0.1 * jax.random.normal(ks[7], (C,), jnp.float32),
        "bn2_beta": 0.1 * jax.random.normal(ks[8], (C,), jnp.float32),
        "bn2_mean": 0.05 * jax.random.normal(ks[9], (C,), jnp.float32),
        "bn2_var": jnp.ones((C,), jnp.float32),
    }

    fwd = jax.jit(functools.partial(basic_block_forward, pad=1, dilation=1))
    out = jax.block_until_ready(fwd(x, params))
    assert out.shape == (N, C, H, W), out.shape

    ref = _reference(x, params, pad=1, dilation=1)
    max_err = float(jnp.max(jnp.abs(out - ref)))
    # bf16 activations/weights/writeback with f32 accumulation -> small delta.
    assert jnp.allclose(out, ref, rtol=5e-2, atol=5e-2), max_err

    print("KERNEL_OK")
</pallas_src>

<mosaic_0001>
module attributes {stable_mosaic.version = 11 : i64} {
  func.func @kernel(%arg0: i32, %arg1: memref<1x16x128xbf16, #tpu.memory_space<vmem>>, %arg2: memref<384x128xbf16, #tpu.memory_space<vmem>>, %arg3: memref<1x128xf32, #tpu.memory_space<vmem>>, %arg4: memref<384x128xbf16, #tpu.memory_space<vmem>>, %arg5: memref<1x128xf32, #tpu.memory_space<vmem>>, %arg6: memref<1x16x128xbf16, #tpu.memory_space<vmem>>, %arg7: memref<48x128xbf16, #tpu.memory_space<vmem>>) attributes {dimension_semantics = [#tpu.dimension_semantics<parallel>], iteration_bounds = array<i64: 2>, scalar_prefetch = 0 : i64, scratch_operands = 1 : i64, tpu.core_type = #tpu.core_type<tc>, window_params = [{transform_indices = @transform_0, window_bounds = array<i64: 1, 16, 128>}, {pipeline_mode = #tpu.pipeline_mode<synchronous>, transform_indices = @transform_1, window_bounds = array<i64: 384, 128>}, {pipeline_mode = #tpu.pipeline_mode<synchronous>, transform_indices = @transform_2, window_bounds = array<i64: 1, 128>}, {pipeline_mode = #tpu.pipeline_mode<synchronous>, transform_indices = @transform_3, window_bounds = array<i64: 384, 128>}, {pipeline_mode = #tpu.pipeline_mode<synchronous>, transform_indices = @transform_4, window_bounds = array<i64: 1, 128>}, {transform_indices = @transform_5, window_bounds = array<i64: 1, 16, 128>}]} {
    %cst = arith.constant 0.000000e+00 : bf16
    %0 = vector.broadcast %cst : bf16 to vector<16x128xbf16>
    %c0 = arith.constant 0 : index
    %c0_0 = arith.constant 0 : index
    %1 = vector.load %arg7[%c0, %c0_0] : memref<48x128xbf16, #tpu.memory_space<vmem>>, vector<16x128xbf16>
    tpu.vector_store %arg7[%c0, %c0_0], %0 {strides = array<i32>} : memref<48x128xbf16, #tpu.memory_space<vmem>>, vector<16x128xbf16>,
    %cst_1 = arith.constant 0.000000e+00 : bf16
    %2 = vector.broadcast %cst_1 : bf16 to vector<16x128xbf16>
    %c32 = arith.constant 32 : index
    %c0_2 = arith.constant 0 : index
    %3 = vector.load %arg7[%c32, %c0_2] : memref<48x128xbf16, #tpu.memory_space<vmem>>, vector<16x128xbf16>
    tpu.vector_store %arg7[%c32, %c0_2], %2 {strides = array<i32>} : memref<48x128xbf16, #tpu.memory_space<vmem>>, vector<16x128xbf16>,
    %c0_3 = arith.constant 0 : index
    %c0_4 = arith.constant 0 : index
    %c0_5 = arith.constant 0 : index
    %4 = vector.load %arg1[%c0_3, %c0_4, %c0_5] : memref<1x16x128xbf16, #tpu.memory_space<vmem>>, vector<1x16x128xbf16>
    %5 = vector.shape_cast %4 : vector<1x16x128xbf16> to vector<16x128xbf16>
    %c16 = arith.constant 16 : index
    %c0_6 = arith.constant 0 : index
    %6 = vector.load %arg7[%c16, %c0_6] : memref<48x128xbf16, #tpu.memory_space<vmem>>, vector<16x128xbf16>
    tpu.vector_store %arg7[%c16, %c0_6], %5 {strides = array<i32>} : memref<48x128xbf16, #tpu.memory_space<vmem>>, vector<16x128xbf16>,
    %c15 = arith.constant 15 : index
    %c0_7 = arith.constant 0 : index
    %7 = vector.load %arg7[%c15, %c0_7] : memref<48x128xbf16, #tpu.memory_space<vmem>>, vector<16x128xbf16>
    %c16_8 = arith.constant 16 : index
    %c0_9 = arith.constant 0 : index
    %8 = vector.load %arg7[%c16_8, %c0_9] : memref<48x128xbf16, #tpu.memory_space<vmem>>, vector<16x128xbf16>
    %c17 = arith.constant 17 : index
    %c0_10 = arith.constant 0 : index
    %9 = vector.load %arg7[%c17, %c0_10] : memref<48x128xbf16, #tpu.memory_space<vmem>>, vector<16x128xbf16>
    %10 = tpu.concatenate %7, %8, %9 in 1 : vector<16x128xbf16>, vector<16x128xbf16>, vector<16x128xbf16> -> vector<16x384xbf16>
    %c0_11 = arith.constant 0 : index
    %c0_12 = arith.constant 0 : index
    %11 = vector.load %arg2[%c0_11, %c0_12] : memref<384x128xbf16, #tpu.memory_space<vmem>>, vector<384x128xbf16>
    %cst_13 = arith.constant dense<0.000000e+00> : vector<16x128xf32>
    %12 = tpu.matmul %10, %11, %cst_13 {dimension_numbers = #tpu.dot_dimension_numbers<[1], [0], [0], [1], [0, 0, 1, 1], [], []>} : vector<16x384xbf16>, vector<384x128xbf16>, vector<16x128xf32> -> vector<16x128xf32>
    %c0_14 = arith.constant 0 : index
    %c0_15 = arith.constant 0 : index
    %13 = vector.load %arg3[%c0_14, %c0_15] : memref<1x128xf32, #tpu.memory_space<vmem>>, vector<1x128xf32>
    %14 = vector.broadcast %13 : vector<1x128xf32> to vector<16x128xf32>
    %15 = arith.addf %12, %14 : vector<16x128xf32>
    %cst_16 = arith.constant 0.000000e+00 : f32
    %16 = vector.broadcast %cst_16 : f32 to vector<16x128xf32>
    %17 = arith.maximumf %15, %16 : vector<16x128xf32>
    %18 = arith.truncf %17 : vector<16x128xf32> to vector<16x128xbf16>
    %c16_17 = arith.constant 16 : index
    %c0_18 = arith.constant 0 : index
    %19 = vector.load %arg7[%c16_17, %c0_18] : memref<48x128xbf16, #tpu.memory_space<vmem>>, vector<16x128xbf16>
    tpu.vector_store %arg7[%c16_17, %c0_18], %18 {strides = array<i32>} : memref<48x128xbf16, #tpu.memory_space<vmem>>, vector<16x128xbf16>,
    %c15_19 = arith.constant 15 : index
    %c0_20 = arith.constant 0 : index
    %20 = vector.load %arg7[%c15_19, %c0_20] : memref<48x128xbf16, #tpu.memory_space<vmem>>, vector<16x128xbf16>
    %c16_21 = arith.constant 16 : index
    %c0_22 = arith.constant 0 : index
    %21 = vector.load %arg7[%c16_21, %c0_22] : memref<48x128xbf16, #tpu.memory_space<vmem>>, vector<16x128xbf16>
    %c17_23 = arith.constant 17 : index
    %c0_24 = arith.constant 0 : index
    %22 = vector.load %arg7[%c17_23, %c0_24] : memref<48x128xbf16, #tpu.memory_space<vmem>>, vector<16x128xbf16>
    %23 = tpu.concatenate %20, %21, %22 in 1 : vector<16x128xbf16>, vector<16x128xbf16>, vector<16x128xbf16> -> vector<16x384xbf16>
    %c0_25 = arith.constant 0 : index
    %c0_26 = arith.constant 0 : index
    %24 = vector.load %arg4[%c0_25, %c0_26] : memref<384x128xbf16, #tpu.memory_space<vmem>>, vector<384x128xbf16>
    %cst_27 = arith.constant dense<0.000000e+00> : vector<16x128xf32>
    %25 = tpu.matmul %23, %24, %cst_27 {dimension_numbers = #tpu.dot_dimension_numbers<[1], [0], [0], [1], [0, 0, 1, 1], [], []>} : vector<16x384xbf16>, vector<384x128xbf16>, vector<16x128xf32> -> vector<16x128xf32>
    %c0_28 = arith.constant 0 : index
    %c0_29 = arith.constant 0 : index
    %26 = vector.load %arg5[%c0_28, %c0_29] : memref<1x128xf32, #tpu.memory_space<vmem>>, vector<1x128xf32>
    %27 = vector.broadcast %26 : vector<1x128xf32> to vector<16x128xf32>
    %28 = arith.addf %25, %27 : vector<16x128xf32>
    %c0_30 = arith.constant 0 : index
    %c0_31 = arith.constant 0 : index
    %c0_32 = arith.constant 0 : index
    %29 = vector.load %arg1[%c0_30, %c0_31, %c0_32] : memref<1x16x128xbf16, #tpu.memory_space<vmem>>, vector<1x16x128xbf16>
    %30 = vector.shape_cast %29 : vector<1x16x128xbf16> to vector<16x128xbf16>
    %31 = arith.extf %30 : vector<16x128xbf16> to vector<16x128xf32>
    %32 = arith.addf %28, %31 : vector<16x128xf32>
    %33 = arith.truncf %32 : vector<16x128xf32> to vector<16x128xbf16>
    %c0_33 = arith.constant 0 : index
    %c0_34 = arith.constant 0 : index
    %c0_35 = arith.constant 0 : index
    %34 = vector.load %arg6[%c0_33, %c0_34, %c0_35] : memref<1x16x128xbf16, #tpu.memory_space<vmem>>, vector<1x16x128xbf16>
    %35 = vector.shape_cast %34 : vector<1x16x128xbf16> to vector<16x128xbf16>
    %36 = vector.shape_cast %33 : vector<16x128xbf16> to vector<1x16x128xbf16>
    tpu.vector_store %arg6[%c0_33, %c0_34, %c0_35], %36 {strides = array<i32>} : memref<1x16x128xbf16, #tpu.memory_space<vmem>>, vector<1x16x128xbf16>,
    return
  }
  func.func @transform_0(%arg0: i32) -> (i32, i32, i32) {
    %c0_i32 = arith.constant 0 : i32
    %c0_i32_0 = arith.constant 0 : i32
    %c0_i32_1 = arith.constant 0 : i32
    return %arg0, %c0_i32, %c0_i32_0 : i32, i32, i32
  }
  func.func @transform_1(%arg0: i32) -> (i32, i32) {
    %c0_i32 = arith.constant 0 : i32
    %c0_i32_0 = arith.constant 0 : i32
    %c0_i32_1 = arith.constant 0 : i32
    return %c0_i32, %c0_i32_0 : i32, i32
  }
  func.func @transform_2(%arg0: i32) -> (i32, i32) {
    %c0_i32 = arith.constant 0 : i32
    %c0_i32_0 = arith.constant 0 : i32
    %c0_i32_1 = arith.constant 0 : i32
    return %c0_i32, %c0_i32_0 : i32, i32
  }
  func.func @transform_3(%arg0: i32) -> (i32, i32) {
    %c0_i32 = arith.constant 0 : i32
    %c0_i32_0 = arith.constant 0 : i32
    %c0_i32_1 = arith.constant 0 : i32
    return %c0_i32, %c0_i32_0 : i32, i32
  }
  func.func @transform_4(%arg0: i32) -> (i32, i32) {
    %c0_i32 = arith.constant 0 : i32
    %c0_i32_0 = arith.constant 0 : i32
    %c0_i32_1 = arith.constant 0 : i32
    return %c0_i32, %c0_i32_0 : i32, i32
  }
  func.func @transform_5(%arg0: i32) -> (i32, i32, i32) {
    %c0_i32 = arith.constant 0 : i32
    %c0_i32_0 = arith.constant 0 : i32
    %c0_i32_1 = arith.constant 0 : i32
    return %arg0, %c0_i32, %c0_i32_0 : i32, i32, i32
  }
}

</mosaic_0001>

<llo_original>
// kernel: tile.13
$region0: #{tile.13}
  #allocation0 [shape = 's32[1]{0}', space=sflag, size = 0x4, scoped, tag = 'scoped memory for tile.13']
  %s0 = inlined_call_operand.vmem [shape: f32[8], index: 0, kind: input, shape index: {}]
  %s1 = inlined_call_operand.vmem [shape: f32[16,8], index: 1, kind: output, shape index: {}]
  // Predicated region
  $region2: #{tile.13} parent=0 // pred_check
    _
  $region3: #{tile.13} parent=0 // pred_check_branch
    %3 = sbr.rel (0) target = $region5
  $region4: #{tile.13} parent=0 // pred_region
    _
  $region5: #{tile.13} parent=0 // pred_fallthru
    _
  %v4 = vld [vmem:[%s0] ss:$0 sm:$0xff]
  %5 = vst [vmem:[%s1] sm:$0xff] %v4
  %s6 = scalar_lea.vmem %s1, 8
  %7 = vst [vmem:[%s6] sm:$0xff] %v4

// kernel: tile.14
$region0: #{tile.14}
  %s0 = inlined_call_operand.vmem [shape: f32[16,8], index: 0, kind: input, shape index: {}]
  %s1 = inlined_call_operand.vmem [shape: f32[1,128], index: 1, kind: output, shape index: {}]
  $region1: #{tile.14} parent=0
    #allocation0 [shape = 'u8[4096]{0}', space=vmem, size = 0x1000, scoped, tag = 'scoped mem for output reshape']
    %v2 = vld [vmem:[%s0] sm:$0x1]
    %vm3 = vcmask 64512
    %4 = vst.msk [vmem:[#allocation0] sm:$0x1] %vm3, %v2
    %s5 = scalar_lea.vmem %s0, 15
    %v6 = vld [vmem:[%s5] sm:$0x1]
    %7 = vrot.lane.b32.xlu0 %v6, 120
    %v8 = vpop.permute.xlu0 %7
    %vm9 = vcmask 1048512
    %10 = vst.msk [vmem:[#allocation0] sm:$0x1] %vm9, %v8
    %s11 = scalar_lea.vmem %s0, 14
    %v12 = vld [vmem:[%s11] sm:$0x1]
    %13 = vrot.lane.b32.xlu0 %v12, 112
    %v14 = vpop.permute.xlu0 %13
    %vm15 = vcmask 982912
    %16 = vst.msk [vmem:[#allocation0] sm:$0x1] %vm15, %v14
    %s17 = scalar_lea.vmem %s0, 13
    %v18 = vld [vmem:[%s17] sm:$0x1]
    %19 = vrot.lane.b32.xlu0 %v18, 104
    %v20 = vpop.permute.xlu0 %19
    %vm21 = vcmask 917312
    %22 = vst.msk [vmem:[#allocation0] sm:$0x1] %vm21, %v20
    %s23 = scalar_lea.vmem %s0, 12
    %v24 = vld [vmem:[%s23] sm:$0x1]
    %25 = vrot.lane.b32.xlu0 %v24, 96
    %v26 = vpop.permute.xlu0 %25
    %vm27 = vcmask 851712
    %28 = vst.msk [vmem:[#allocation0] sm:$0x1] %vm27, %v26
    %s29 = scalar_lea.vmem %s0, 11
    %v30 = vld [vmem:[%s29] sm:$0x1]
    %31 = vrot.lane.b32.xlu0 %v30, 88
    %v32 = vpop.permute.xlu0 %31
    %vm33 = vcmask 786112
    %34 = vst.msk [vmem:[#allocation0] sm:$0x1] %vm33, %v32
    %s35 = scalar_lea.vmem %s0, 10
    %v36 = vld [vmem:[%s35] sm:$0x1]
    %37 = vrot.lane.b32.xlu0 %v36, 80
    %v38 = vpop.permute.xlu0 %37
    %vm39 = vcmask 720512
    %40 = vst.msk [vmem:[#allocation0] sm:$0x1] %vm39, %v38
    %s41 = scalar_lea.vmem %s0, 9
    %v42 = vld [vmem:[%s41] sm:$0x1]
    %43 = vrot.lane.b32.xlu0 %v42, 72
    %v44 = vpop.permute.xlu0 %43
    %vm45 = vcmask 654912
    %46 = vst.msk [vmem:[#allocation0] sm:$0x1] %vm45, %v44
    %s47 = scalar_lea.vmem %s0, 8
    %v48 = vld [vmem:[%s47] sm:$0x1]
    %49 = vrot.lane.b32.xlu0 %v48, 64
    %v50 = vpop.permute.xlu0 %49
    %vm51 = vcmask 589312
    %52 = vst.msk [vmem:[#allocation0] sm:$0x1] %vm51, %v50
    %s53 = scalar_lea.vmem %s0, 7
    %v54 = vld [vmem:[%s53] sm:$0x1]
    %55 = vrot.lane.b32.xlu0 %v54, 56
    %v56 = vpop.permute.xlu0 %55
    %vm57 = vcmask 523712
    %58 = vst.msk [vmem:[#allocation0] sm:$0x1] %vm57, %v56
    %s59 = scalar_lea.vmem %s0, 6
    %v60 = vld [vmem:[%s59] sm:$0x1]
    %61 = vrot.lane.b32.xlu0 %v60, 48
    %v62 = vpop.permute.xlu0 %61
    %vm63 = vcmask 458112
    %64 = vst.msk [vmem:[#allocation0] sm:$0x1] %vm63, %v62
    %s65 = scalar_lea.vmem %s0, 5
    %v66 = vld [vmem:[%s65] sm:$0x1]
    %67 = vrot.lane.b32.xlu0 %v66, 40
    %v68 = vpop.permute.xlu0 %67
    %vm69 = vcmask 392512
    %70 = vst.msk [vmem:[#allocation0] sm:$0x1] %vm69, %v68
    %s71 = scalar_lea.vmem %s0, 4
    %v72 = vld [vmem:[%s71] sm:$0x1]
    %73 = vrot.lane.b32.xlu0 %v72, 32
    %v74 = vpop.permute.xlu0 %73
    %vm75 = vcmask 326912
    %76 = vst.msk [vmem:[#allocation0] sm:$0x1] %vm75, %v74
    %s77 = scalar_lea.vmem %s0, 3
    %v78 = vld [vmem:[%s77] sm:$0x1]
    %79 = vrot.lane.b32.xlu0 %v78, 24
    %v80 = vpop.permute.xlu0 %79
    %vm81 = vcmask 261312
    %82 = vst.msk [vmem:[#allocation0] sm:$0x1] %vm81, %v80
    %s83 = scalar_lea.vmem %s0, 2
    %v84 = vld [vmem:[%s83] sm:$0x1]
    %85 = vrot.lane.b32.xlu0 %v84, 16
    %v86 = vpop.permute.xlu0 %85
    %vm87 = vcmask 195712
    %88 = vst.msk [vmem:[#allocation0] sm:$0x1] %vm87, %v86
    %s89 = scalar_lea.vmem %s0, 1
    %v90 = vld [vmem:[%s89] sm:$0x1]
    %91 = vrot.lane.b32.xlu0 %v90, 8
    %v92 = vpop.permute.xlu0 %91
    %vm93 = vcmask 130112
    %94 = vst.msk [vmem:[#allocation0] sm:$0x1] %vm93, %v92
    %s96 = ssub.s32 2, 1
    %v97 = vld [vmem:[#allocation0] sm:%s96]
    %s99 = ssub.s32 2, 1
    %100 = vst [vmem:[%s1] sm:%s99] %v97

// kernel: basic_block_forward.1
$region0: #{basic_block_forward.1}
  #allocation0 [shape = 'u32[]', space=smem, size = 0x4, offset = 0x4, fixed_abs, tag = 'smem constant byte address 0x4 - core index']
  #allocation1 [shape = 'u32[72,128]{1,0:T(1,128)}', space=vmem, size = 0x9000, scoped, tag = 'internal scratch']
  #allocation2 [shape = 'bf16[48,128]{1,0:T(8,128)(2,1)}', space=vmem, size = 0x3000, scoped, tag = 'scratch operand']
  %s0 = inlined_call_operand.vmem [shape: bf16[2,16,128], index: 0, kind: input, shape index: {}]
  %s1 = inlined_call_operand.vmem [shape: bf16[384,128], index: 1, kind: input, shape index: {}]
  %s2 = inlined_call_operand.vmem [shape: f32[1,128], index: 2, kind: input, shape index: {}]
  %s3 = inlined_call_operand.vmem [shape: bf16[384,128], index: 3, kind: input, shape index: {}]
  %s4 = inlined_call_operand.vmem [shape: f32[1,128], index: 4, kind: input, shape index: {}]
  %s5 = inlined_call_operand.vmem [shape: bf16[2,16,128], index: 5, kind: output, shape index: {}]
  %s6 = sld [smem:[#allocation0]]
  $region53: #{basic_block_forward.1} parent=0
    _
  %s8 = ssub.s32 1, %s6
  %s9 = scalar_select 0, %s8, %s6
  loop: start=0, step=1, limit=4
  $region2: #{basic_block_forward.1} parent=0 // loop_pre_header
    _
  $region3: #{basic_block_forward.1} parent=0 // loop_header
    %s11 = sphi 0, %s15
    %p12 = scmp.ge.s32.totalorder %s11, 4
    %s21 = sphi 0, %s23
    %s24 = sphi 0, %s21
    %s25 = sphi 0, %s24
    %s41 = sphi 0, %s25
    %s45 = sphi 0, %s45
    %s47 = sphi 0, %s45
    %s48 = sphi 0, %s47
    %s62 = sphi 0, %s48
    %s66 = sphi 0, %s66
    %s68 = sphi 0, %s66
    %s69 = sphi 0, %s68
    %s83 = sphi 0, %s69
    %s87 = sphi 0, %s87
    %s89 = sphi 0, %s87
    %s90 = sphi 0, %s89
    %s104 = sphi 0, %s90
    %s108 = sphi 0, %s108
    %s110 = sphi 0, %s108
    %s111 = sphi 0, %s110
    %s125 = sphi 0, %s111
    %s131 = sphi 0, %s133
    %s134 = sphi 0, %s131
    %s135 = sphi 0, %s134
    %s151 = sphi 0, %s135
  $region4: #{basic_block_forward.1} parent=0 // loop_header_branch
    %14 = sbr.rel (%p12) target = $region8
  $region5: #{basic_block_forward.1} parent=0 // loop_body
    %s16 = ssub.s32 %s11, 1
    %s17 = ssub.s32 %s11, 2
    %s18 = sadd.s32 %s11, 1
    %s19 = ssub.s32 %s11, %s18
    %p20 = scmp.eq.s32.totalorder %s19, 0
    %s22 = sadd.s32 %s21, 1
    %s23 = scalar_select %p20, %s21, %s22
    %p26 = pneg %p20
    %p27 = scmp.eq.s32.totalorder %s11, 1
    %p28 = por %p26, %p27
    %p29 = scmp.ne.s32.totalorder %s21, %s24
    %p30 = scmp.eq.s32.totalorder %s11, 0
    %p31 = por %p29, %p30
    %p32 = scmp.ne.s32.totalorder %s21, %s24
    %p33 = scmp.eq.s32.totalorder %s16, 1
    %p34 = por %p32, %p33
    %p35 = scmp.ne.s32.totalorder %s24, %s25
    %p36 = scmp.eq.s32.totalorder %s16, 0
    %p37 = por %p35, %p36
    %p38 = scmp.ne.s32.totalorder %s24, %s25
    %p39 = scmp.eq.s32.totalorder %s17, 1
    %p40 = por %p38, %p39
    %p42 = scmp.ne.s32.totalorder %s25, %s41
    %p43 = scmp.eq.s32.totalorder %s17, 0
    %p44 = por %p42, %p43
    %s46 = sadd.s32 %s45, 1
    %p49 = scmp.eq.s32.totalorder %s11, 1
    %p50 = scmp.ne.s32.totalorder %s45, %s47
    %p51 = scmp.eq.s32.totalorder %s11, 0
    %p52 = por %p50, %p51
    %p53 = scmp.ne.s32.totalorder %s45, %s47
    %p54 = scmp.eq.s32.totalorder %s16, 1
    %p55 = por %p53, %p54
    %p56 = scmp.ne.s32.totalorder %s47, %s48
    %p57 = scmp.eq.s32.totalorder %s16, 0
    %p58 = por %p56, %p57
    %p59 = scmp.ne.s32.totalorder %s47, %s48
    %p60 = scmp.eq.s32.totalorder %s17, 1
    %p61 = por %p59, %p60
    %p63 = scmp.ne.s32.totalorder %s48, %s62
    %p64 = scmp.eq.s32.totalorder %s17, 0
    %p65 = por %p63, %p64
    %s67 = sadd.s32 %s66, 1
    %p70 = scmp.eq.s32.totalorder %s11, 1
    %p71 = scmp.ne.s32.totalorder %s66, %s68
    %p72 = scmp.eq.s32.totalorder %s11, 0
    %p73 = por %p71, %p72
    %p74 = scmp.ne.s32.totalorder %s66, %s68
    %p75 = scmp.eq.s32.totalorder %s16, 1
    %p76 = por %p74, %p75
    %p77 = scmp.ne.s32.totalorder %s68, %s69
    %p78 = scmp.eq.s32.totalorder %s16, 0
    %p79 = por %p77, %p78
    %p80 = scmp.ne.s32.totalorder %s68, %s69
    %p81 = scmp.eq.s32.totalorder %s17, 1
    %p82 = por %p80, %p81
    %p84 = scmp.ne.s32.totalorder %s69, %s83
    %p85 = scmp.eq.s32.totalorder %s17, 0
    %p86 = por %p84, %p85
    %s88 = sadd.s32 %s87, 1
    %p91 = scmp.eq.s32.totalorder %s11, 1
    %p92 = scmp.ne.s32.totalorder %s87, %s89
    %p93 = scmp.eq.s32.totalorder %s11, 0
    %p94 = por %p92, %p93
    %p95 = scmp.ne.s32.totalorder %s87, %s89
    %p96 = scmp.eq.s32.totalorder %s16, 1
    %p97 = por %p95, %p96
    %p98 = scmp.ne.s32.totalorder %s89, %s90
    %p99 = scmp.eq.s32.totalorder %s16, 0
    %p100 = por %p98, %p99
    %p101 = scmp.ne.s32.totalorder %s89, %s90
    %p102 = scmp.eq.s32.totalorder %s17, 1
    %p103 = por %p101, %p102
    %p105 = scmp.ne.s32.totalorder %s90, %s104
    %p106 = scmp.eq.s32.totalorder %s17, 0
    %p107 = por %p105, %p106
    %s109 = sadd.s32 %s108, 1
    %p112 = scmp.eq.s32.totalorder %s11, 1
    %p113 = scmp.ne.s32.totalorder %s108, %s110
    %p114 = scmp.eq.s32.totalorder %s11, 0
    %p115 = por %p113, %p114
    %p116 = scmp.ne.s32.totalorder %s108, %s110
    %p117 = scmp.eq.s32.totalorder %s16, 1
    %p118 = por %p116, %p117
    %p119 = scmp.ne.s32.totalorder %s110, %s111
    %p120 = scmp.eq.s32.totalorder %s16, 0
    %p121 = por %p119, %p120
    %p122 = scmp.ne.s32.totalorder %s110, %s111
    %p123 = scmp.eq.s32.totalorder %s17, 1
    %p124 = por %p122, %p123
    %p126 = scmp.ne.s32.totalorder %s111, %s125
    %p127 = scmp.eq.s32.totalorder %s17, 0
    %p128 = por %p126, %p127
    %s129 = ssub.s32 %s11, %s18
    %p130 = scmp.eq.s32.totalorder %s129, 0
    %s132 = sadd.s32 %s131, 1
    %s133 = scalar_select %p130, %s131, %s132
    %p136 = pneg %p130
    %p137 = scmp.eq.s32.totalorder %s11, 1
    %p138 = por %p136, %p137
    %p139 = scmp.ne.s32.totalorder %s131, %s134
    %p140 = scmp.eq.s32.totalorder %s11, 0
    %p141 = por %p139, %p140
    %p142 = scmp.ne.s32.totalorder %s131, %s134
    %p143 = scmp.eq.s32.totalorder %s16, 1
    %p144 = por %p142, %p143
    %p145 = scmp.ne.s32.totalorder %s134, %s135
    %p146 = scmp.eq.s32.totalorder %s16, 0
    %p147 = por %p145, %p146
    %p148 = scmp.ne.s32.totalorder %s134, %s135
    %p149 = scmp.eq.s32.totalorder %s17, 1
    %p150 = por %p148, %p149
    %p152 = scmp.ne.s32.totalorder %s135, %s151
    %p153 = scmp.eq.s32.totalorder %s17, 0
    %p154 = por %p152, %p153
    %p155 = scmp.le.s32.totalorder 1, %s11
    %p156 = scmp.lt.s32.totalorder %s11, 3
    %p157 = pnand %p155, %p156
    %p158 = pneg %p157
    // Predicated region
    $region9: #{basic_block_forward.1} parent=5 // pred_check
      _
    $region10: #{basic_block_forward.1} parent=5 // pred_check_branch
      %160 = sbr.rel (%p157) target = $region12
    $region11: #{basic_block_forward.1} parent=5 // pred_region
      %s161 = ssub.s32 %s11, 1
      // Predicated region
      $region13: #{basic_block_forward.1} parent=11 // pred_check
        %p162 = pneg %p58
      $region14: #{basic_block_forward.1} parent=11 // pred_check_branch
        %164 = sbr.rel (%p162) target = $region16
      $region15: #{basic_block_forward.1} parent=11 // pred_region
        _
      $region16: #{basic_block_forward.1} parent=11 // pred_fallthru
        _
      // Predicated region
      $region17: #{basic_block_forward.1} parent=11 // pred_check
        %p165 = pneg %p79
      $region18: #{basic_block_forward.1} parent=11 // pred_check_branch
        %167 = sbr.rel (%p165) target = $region20
      $region19: #{basic_block_forward.1} parent=11 // pred_region
        _
      $region20: #{basic_block_forward.1} parent=11 // pred_fallthru
        _
      // Predicated region
      $region21: #{basic_block_forward.1} parent=11 // pred_check
        %p168 = pneg %p100
      $region22: #{basic_block_forward.1} parent=11 // pred_check_branch
        %170 = sbr.rel (%p168) target = $region24
      $region23: #{basic_block_forward.1} parent=11 // pred_region
        _
      $region24: #{basic_block_forward.1} parent=11 // pred_fallthru
        _
      // Predicated region
      $region25: #{basic_block_forward.1} parent=11 // pred_check
        %p171 = pneg %p121
      $region26: #{basic_block_forward.1} parent=11 // pred_check_branch
        %173 = sbr.rel (%p171) target = $region28
      $region27: #{basic_block_forward.1} parent=11 // pred_region
        _
      $region28: #{basic_block_forward.1} parent=11 // pred_fallthru
        _
    $region12: #{basic_block_forward.1} parent=5 // pred_fallthru
      _
    %p174 = scmp.lt.s32.totalorder %s11, 2
    // Predicated region
    $region29: #{basic_block_forward.1} parent=5 // pred_check
      %p175 = pneg %p174
    $region30: #{basic_block_forward.1} parent=5 // pred_check_branch
      %177 = sbr.rel (%p175) target = $region32
    $region31: #{basic_block_forward.1} parent=5 // pred_region
      // Predicated region
      $region33: #{basic_block_forward.1} parent=31 // pred_check
        %p178 = pneg %p31
      $region34: #{basic_block_forward.1} parent=31 // pred_check_branch
        %180 = sbr.rel (%p178) target = $region36
      $region35: #{basic_block_forward.1} parent=31 // pred_region
        %p181 = scmp.lt.s32.totalorder %s11, 1
        %s182 = scalar_select %p181, %s11, 1
        %s183 = smul.addr %s182, 2
        %s184 = smul.addr %s183, 4
        %s185 = scalar_lea.vmem %s0, %s184
      $region36: #{basic_block_forward.1} parent=31 // pred_fallthru
        _
    $region32: #{basic_block_forward.1} parent=5 // pred_fallthru
      _
    %p186 = scmp.le.s32.totalorder 1, %s11
    %p187 = scmp.lt.s32.totalorder %s11, 3
    %p188 = pnand %p186, %p187
    %p189 = pneg %p188
    // Predicated region
    $region37: #{basic_block_forward.1} parent=5 // pred_check
      _
    $region38: #{basic_block_forward.1} parent=5 // pred_check_branch
      %191 = sbr.rel (%p188) target = $region40
    $region39: #{basic_block_forward.1} parent=5 // pred_region
      %s192 = ssub.s32 %s11, 1
      %p193 = scmp.lt.s32.totalorder %s16, 1
      %s194 = scalar_select %p193, %s16, 1
      %s195 = smul.addr %s194, 2
      %s196 = smul.addr %s195, 4
      %s197 = scalar_lea.vmem %s0, %s196
      %p198 = pneg %p37
      %p199 = pneg %p34
      %p200 = pneg %p58
      %p201 = pneg %p55
      %p202 = pneg %p79
      %p203 = pneg %p76
      %p204 = pneg %p100
      %p205 = pneg %p97
      %p206 = pneg %p121
      %p207 = pneg %p118
      %p208 = pneg %p147
      %p209 = pneg %p144
      %p210 = scmp.lt.s32.totalorder %s16, 1
      %s211 = scalar_select %p210, %s16, 1
      %s212 = smul.addr %s211, 2
      %s213 = smul.addr %s212, 4
      %s214 = scalar_lea.vmem %s5, %s213
      %p215 = scmp.lt.s32.totalorder %s16, 1
      %s216 = scalar_select %p215, %s16, 1
      %s217 = smul.addr %s216, 2
      %s218 = smul.addr %s217, 4
      %s219 = scalar_lea.vmem %s0, %s218
      %p220 = scmp.lt.s32.totalorder %s16, 1
      %s221 = scalar_select %p220, %s16, 1
      %s222 = smul.addr %s221, 2
      %s223 = smul.addr %s222, 4
      %s224 = scalar_lea.vmem %s5, %s223
      %226 = vst [vmem:[#allocation2] sm:$0xf] 0
      %227 = vst [vmem:[#allocation2 + $0x4] sm:$0xf] 0
      %228 = vst [vmem:[#allocation2 + $0x10] sm:$0xf] 0
      %229 = vst [vmem:[#allocation2 + $0x14] sm:$0xf] 0
      %v230 = vld [vmem:[%s219] sm:$0xf]
      %v231 = vld [vmem:[%s219 + $0x4] sm:$0xf]
      %232 = vst [vmem:[#allocation2 + $0x8] sm:$0xf] %v230
      %233 = vst [vmem:[#allocation2 + $0xc] sm:$0xf] %v231
      %v234 = vld [vmem:[#allocation2 + $0x4] sm:$0x8]
      %v235 = vld [vmem:[#allocation2 + $0x8] sm:$0xf]
      %v236 = vld [vmem:[#allocation2 + $0xc] sm:$0xf]
      %v237 = vld [vmem:[#allocation2 + $0x10] sm:$0x1]
      %v241 = vunpack.c.l.b16 %v234
      %v242 = vunpack.c.l.b16 %v235
      %v243 = vunpack.c.l.b16 %v236
      %v244 = vpack.c.b16 %v242, %v241
      %v245 = vpack.c.b16 %v243, %v243
      %v246 = vpack.c.b16 %v243, %v242
      %v248 = vshrl.u32 %v246, 16
      %v250 = vrot.slane %v248, 4
      %v251 = vshll.u32 %v246, 16
      %v253 = vrot.slane %v251, 5
      %v254 = vor.u32 %v250, %v253
      %v256 = vunpack.c.l.b16 %v237
      %v257 = vpack.c.b16 %v256, %v256
      %vm258 = vcmask 1042432
      %v259 = vrot.slane %v246, 5
      %v260 = vrot.slane %v257, 5
      %v261 = vsel %vm258, %v259, %v260
      %v262 = vld [vmem:[%s1] sm:$0xf]
      %v263 = vld [vmem:[%s1 + $0x4] sm:$0xf]
      %v264 = vld [vmem:[%s1 + $0x8] sm:$0xf]
      %v265 = vld [vmem:[%s1 + $0xc] sm:$0xf]
      %v266 = vld [vmem:[%s1 + $0x10] sm:$0xf]
      %v267 = vld [vmem:[%s1 + $0x14] sm:$0xf]
      %v268 = vld [vmem:[%s1 + $0x18] sm:$0xf]
      %v269 = vld [vmem:[%s1 + $0x1c] sm:$0xf]
      %v270 = vld [vmem:[%s1 + $0x20] sm:$0xf]
      %v271 = vld [vmem:[%s1 + $0x24] sm:$0xf]
      %v272 = vld [vmem:[%s1 + $0x28] sm:$0xf]
      %v273 = vld [vmem:[%s1 + $0x2c] sm:$0xf]
      %v274 = vld [vmem:[%s1 + $0x30] sm:$0xf]
      %v275 = vld [vmem:[%s1 + $0x34] sm:$0xf]
      %v276 = vld [vmem:[%s1 + $0x38] sm:$0xf]
      %v277 = vld [vmem:[%s1 + $0x3c] sm:$0xf]
      %v278 = vld [vmem:[%s1 + $0x40] sm:$0xf]
      %v279 = vld [vmem:[%s1 + $0x44] sm:$0xf]
      %v280 = vld [vmem:[%s1 + $0x48] sm:$0xf]
      %v281 = vld [vmem:[%s1 + $0x4c] sm:$0xf]
      %v282 = vld [vmem:[%s1 + $0x50] sm:$0xf]
      %v283 = vld [vmem:[%s1 + $0x54] sm:$0xf]
      %v284 = vld [vmem:[%s1 + $0x58] sm:$0xf]
      %v285 = vld [vmem:[%s1 + $0x5c] sm:$0xf]
      %v286 = vld [vmem:[%s1 + $0x60] sm:$0xf]
      %v287 = vld [vmem:[%s1 + $0x64] sm:$0xf]
      %v288 = vld [vmem:[%s1 + $0x68] sm:$0xf]
      %v289 = vld [vmem:[%s1 + $0x6c] sm:$0xf]
      %v290 = vld [vmem:[%s1 + $0x70] sm:$0xf]
      %v291 = vld [vmem:[%s1 + $0x74] sm:$0xf]
      %v292 = vld [vmem:[%s1 + $0x78] sm:$0xf]
      %v293 = vld [vmem:[%s1 + $0x7c] sm:$0xf]
      %v294 = vld [vmem:[%s1 + $0x80] sm:$0xf]
      %v295 = vld [vmem:[%s1 + $0x84] sm:$0xf]
      %v296 = vld [vmem:[%s1 + $0x88] sm:$0xf]
      %v297 = vld [vmem:[%s1 + $0x8c] sm:$0xf]
      %v298 = vld [vmem:[%s1 + $0x90] sm:$0xf]
      %v299 = vld [vmem:[%s1 + $0x94] sm:$0xf]
      %v300 = vld [vmem:[%s1 + $0x98] sm:$0xf]
      %v301 = vld [vmem:[%s1 + $0x9c] sm:$0xf]
      %v302 = vld [vmem:[%s1 + $0xa0] sm:$0xf]
      %v303 = vld [vmem:[%s1 + $0xa4] sm:$0xf]
      %v304 = vld [vmem:[%s1 + $0xa8] sm:$0xf]
      %v305 = vld [vmem:[%s1 + $0xac] sm:$0xf]
      %v306 = vld [vmem:[%s1 + $0xb0] sm:$0xf]
      %v307 = vld [vmem:[%s1 + $0xb4] sm:$0xf]
      %v308 = vld [vmem:[%s1 + $0xb8] sm:$0xf]
      %v309 = vld [vmem:[%s1 + $0xbc] sm:$0xf]
      %v310 = vld [vmem:[%s2] sm:$0x1]
      %v312 = vperm.slane %v310, 0
      %vm314 = vsmask.f32 4352
      %v316 = vshrl.u32 %v244, 16
      %v318 = vrot.slane %v316, 3
      %v319 = vshll.u32 %v244, 16
      %v321 = vrot.slane %v319, 4
      %v322 = vor.u32 %v318, %v321
      %v324 = vshrl.u32 %v245, 16
      %v326 = vrot.slane %v324, 3
      %v327 = vshll.u32 %v245, 16
      %v329 = vrot.slane %v327, 4
      %v330 = vor.u32 %v326, %v329
      %v331 = vsel %vm314, %v322, %v330
      %v333 = vshrl.u32 %v254, 16
      %v335 = vrot.slane %v333, 3
      %v336 = vshll.u32 %v254, 16
      %v338 = vrot.slane %v336, 4
      %v339 = vor.u32 %v335, %v338
      %v340 = vsel %vm314, %v339, %v339
      %v342 = vshrl.u32 %v259, 16
      %v344 = vrot.slane %v342, 3
      %v345 = vshll.u32 %v259, 16
      %v347 = vrot.slane %v345, 4
      %v348 = vor.u32 %v344, %v347
      %v350 = vshrl.u32 %v261, 16
      %v352 = vrot.slane %v350, 3
      %v353 = vshll.u32 %v261, 16
      %v355 = vrot.slane %v353, 4
      %v356 = vor.u32 %v352, %v355
      %v357 = vsel %vm314, %v348, %v356
      %v409 = vunpack.c.l.b16 %v262
      %v410 = vunpack.c.l.b16 %v263
      %v411 = vunpack.c.l.b16 %v264
      %v412 = vunpack.c.l.b16 %v265
      %v413 = vunpack.c.l.b16 %v266
      %v414 = vunpack.c.l.b16 %v267
      %v415 = vunpack.c.l.b16 %v268
      %v416 = vunpack.c.l.b16 %v269
      %v417 = vunpack.c.l.b16 %v270
      %v418 = vunpack.c.l.b16 %v271
      %v419 = vunpack.c.l.b16 %v272
      %v420 = vunpack.c.l.b16 %v273
      %v421 = vunpack.c.l.b16 %v274
      %v422 = vunpack.c.l.b16 %v275
      %v423 = vunpack.c.l.b16 %v276
      %v424 = vunpack.c.l.b16 %v277
      %v425 = vunpack.c.l.b16 %v278
      %v426 = vunpack.c.l.b16 %v279
      %v427 = vunpack.c.l.b16 %v280
      %v428 = vunpack.c.l.b16 %v281
      %v429 = vunpack.c.l.b16 %v282
      %v430 = vunpack.c.l.b16 %v283
      %v431 = vunpack.c.l.b16 %v284
      %v432 = vunpack.c.l.b16 %v285
      %v433 = vunpack.c.l.b16 %v286
      %v434 = vunpack.c.l.b16 %v287
      %v435 = vunpack.c.l.b16 %v288
      %v436 = vunpack.c.l.b16 %v289
      %v437 = vunpack.c.l.b16 %v290
      %v438 = vunpack.c.l.b16 %v291
      %v439 = vunpack.c.l.b16 %v292
      %v440 = vunpack.c.l.b16 %v293
      %v441 = vunpack.c.l.b16 %v294
      %v442 = vunpack.c.l.b16 %v295
      %v443 = vunpack.c.l.b16 %v296
      %v444 = vunpack.c.l.b16 %v297
      %v445 = vunpack.c.l.b16 %v298
      %v446 = vunpack.c.l.b16 %v299
      %v447 = vunpack.c.l.b16 %v300
      %v448 = vunpack.c.l.b16 %v301
      %v449 = vunpack.c.l.b16 %v302
      %v450 = vunpack.c.l.b16 %v303
      %v451 = vunpack.c.l.b16 %v304
      %v452 = vunpack.c.l.b16 %v305
      %v453 = vunpack.c.l.b16 %v306
      %v454 = vunpack.c.l.b16 %v307
      %v455 = vunpack.c.l.b16 %v308
      %v456 = vunpack.c.l.b16 %v309
      %v457 = vpack.c.b16 %v410, %v409
      %v458 = vpack.c.b16 %v412, %v411
      %v459 = vpack.c.b16 %v414, %v413
      %v460 = vpack.c.b16 %v416, %v415
      %v461 = vpack.c.b16 %v418, %v417
      %v462 = vpack.c.b16 %v420, %v419
      %v463 = vpack.c.b16 %v422, %v421
      %v464 = vpack.c.b16 %v424, %v423
      %v465 = vpack.c.b16 %v426, %v425
      %v466 = vpack.c.b16 %v428, %v427
      %v467 = vpack.c.b16 %v430, %v429
      %v468 = vpack.c.b16 %v432, %v431
      %v469 = vpack.c.b16 %v434, %v433
      %v470 = vpack.c.b16 %v436, %v435
      %v471 = vpack.c.b16 %v438, %v437
      %v472 = vpack.c.b16 %v440, %v439
      %v473 = vpack.c.b16 %v442, %v441
      %v474 = vpack.c.b16 %v444, %v443
      %v475 = vpack.c.b16 %v446, %v445
      %v476 = vpack.c.b16 %v448, %v447
      %v477 = vpack.c.b16 %v450, %v449
      %v478 = vpack.c.b16 %v452, %v451
      %v479 = vpack.c.b16 %v454, %v453
      %v480 = vpack.c.b16 %v456, %v455
      %505 = vmatpush.bf16.msra.mxu0 %v464
      %506 = vmatpush.bf16.msra.mxu0 %v463
      %507 = vmatpush.bf16.msra.mxu0 %v462
      %508 = vmatpush.bf16.msra.mxu0 %v461
      %509 = vmatpush.bf16.msra.mxu0 %v460
      %510 = vmatpush.bf16.msra.mxu0 %v459
      %511 = vmatpush.bf16.msra.mxu0 %v458
      %512 = vmatpush.bf16.msra.mxu0 %v457
      %513 = vmatmul.bf16.gmra.mxu0 %v331
      %v514 = vpop.f32.mrf.mxu0
      %v515 = vadd.f32 %v312, %v514
      %v516 = vpop.f32.mrf.mxu0
      %v517 = vadd.f32 %v312, %v516
      %518 = vdwg.mxu0
      %519 = vmatpush.bf16.msra.mxu0 %v472
      %520 = vmatpush.bf16.msra.mxu0 %v471
      %521 = vmatpush.bf16.msra.mxu0 %v470
      %522 = vmatpush.bf16.msra.mxu0 %v469
      %523 = vmatpush.bf16.msra.mxu0 %v468
      %524 = vmatpush.bf16.msra.mxu0 %v467
      %525 = vmatpush.bf16.msra.mxu0 %v466
      %526 = vmatpush.bf16.msra.mxu0 %v465
      %527 = vmatmul.bf16.gmra.mxu0 %v340
      %v528 = vpop.f32.mrf.mxu0
      %v529 = vadd.f32 %v515, %v528
      %v530 = vpop.f32.mrf.mxu0
      %v531 = vadd.f32 %v517, %v530
      %532 = vdwg.mxu0
      %533 = vmatpush.bf16.msra.mxu0 %v480
      %534 = vmatpush.bf16.msra.mxu0 %v479
      %535 = vmatpush.bf16.msra.mxu0 %v478
      %536 = vmatpush.bf16.msra.mxu0 %v477
      %537 = vmatpush.bf16.msra.mxu0 %v476
      %538 = vmatpush.bf16.msra.mxu0 %v475
      %539 = vmatpush.bf16.msra.mxu0 %v474
      %540 = vmatpush.bf16.msra.mxu0 %v473
      %541 = vmatmul.bf16.gmra.mxu0 %v357
      %v542 = vpop.f32.mrf.mxu0
      %v543 = vadd.f32 %v529, %v542
      %v544 = vpop.f32.mrf.mxu0
      %v545 = vadd.f32 %v531, %v544
      %546 = vdwg.mxu0
      %v547 = vmax.f32 %v543, 0.0
      %v548 = vmax.f32 %v545, 0.0
      %v549 = vpack.c.bf16 %v547, %v547
      %v550 = vpack.c.bf16 %v548, %v548
      %551 = vst [vmem:[#allocation2 + $0x8] sm:$0xf] %v549
      %552 = vst [vmem:[#allocation2 + $0xc] sm:$0xf] %v550
      %v553 = vld [vmem:[#allocation2 + $0x4] sm:$0x8]
      %v554 = vld [vmem:[#allocation2 + $0x8] sm:$0xf]
      %v555 = vld [vmem:[#allocation2 + $0xc] sm:$0xf]
      %v556 = vld [vmem:[#allocation2 + $0x10] sm:$0x1]
      %v560 = vunpack.c.l.b16 %v553
      %v561 = vunpack.c.l.b16 %v554
      %v562 = vunpack.c.l.b16 %v555
      %v563 = vpack.c.b16 %v561, %v560
      %v564 = vpack.c.b16 %v562, %v562
      %v565 = vpack.c.b16 %v562, %v561
      %v567 = vshrl.u32 %v565, 16
      %v569 = vrot.slane %v567, 4
      %v570 = vshll.u32 %v565, 16
      %v572 = vrot.slane %v570, 5
      %v573 = vor.u32 %v569, %v572
      %v575 = vunpack.c.l.b16 %v556
      %v576 = vpack.c.b16 %v575, %v575
      %v577 = vrot.slane %v565, 5
      %v578 = vrot.slane %v576, 5
      %v579 = vsel %vm258, %v577, %v578
      %v580 = vld [vmem:[%s3] sm:$0xf]
      %v581 = vld [vmem:[%s3 + $0x4] sm:$0xf]
      %v582 = vld [vmem:[%s3 + $0x8] sm:$0xf]
      %v583 = vld [vmem:[%s3 + $0xc] sm:$0xf]
      %v584 = vld [vmem:[%s3 + $0x10] sm:$0xf]
      %v585 = vld [vmem:[%s3 + $0x14] sm:$0xf]
      %v586 = vld [vmem:[%s3 + $0x18] sm:$0xf]
      %v587 = vld [vmem:[%s3 + $0x1c] sm:$0xf]
      %v588 = vld [vmem:[%s3 + $0x20] sm:$0xf]
      %v589 = vld [vmem:[%s3 + $0x24] sm:$0xf]
      %v590 = vld [vmem:[%s3 + $0x28] sm:$0xf]
      %v591 = vld [vmem:[%s3 + $0x2c] sm:$0xf]
      %v592 = vld [vmem:[%s3 + $0x30] sm:$0xf]
      %v593 = vld [vmem:[%s3 + $0x34] sm:$0xf]
      %v594 = vld [vmem:[%s3 + $0x38] sm:$0xf]
      %v595 = vld [vmem:[%s3 + $0x3c] sm:$0xf]
      %v596 = vld [vmem:[%s3 + $0x40] sm:$0xf]
      %v597 = vld [vmem:[%s3 + $0x44] sm:$0xf]
      %v598 = vld [vmem:[%s3 + $0x48] sm:$0xf]
      %v599 = vld [vmem:[%s3 + $0x4c] sm:$0xf]
      %v600 = vld [vmem:[%s3 + $0x50] sm:$0xf]
      %v601 = vld [vmem:[%s3 + $0x54] sm:$0xf]
      %v602 = vld [vmem:[%s3 + $0x58] sm:$0xf]
      %v603 = vld [vmem:[%s3 + $0x5c] sm:$0xf]
      %v604 = vld [vmem:[%s3 + $0x60] sm:$0xf]
      %v605 = vld [vmem:[%s3 + $0x64] sm:$0xf]
      %v606 = vld [vmem:[%s3 + $0x68] sm:$0xf]
      %v607 = vld [vmem:[%s3 + $0x6c] sm:$0xf]
      %v608 = vld [vmem:[%s3 + $0x70] sm:$0xf]
      %v609 = vld [vmem:[%s3 + $0x74] sm:$0xf]
      %v610 = vld [vmem:[%s3 + $0x78] sm:$0xf]
      %v611 = vld [vmem:[%s3 + $0x7c] sm:$0xf]
      %v612 = vld [vmem:[%s3 + $0x80] sm:$0xf]
      %v613 = vld [vmem:[%s3 + $0x84] sm:$0xf]
      %v614 = vld [vmem:[%s3 + $0x88] sm:$0xf]
      %v615 = vld [vmem:[%s3 + $0x8c] sm:$0xf]
      %v616 = vld [vmem:[%s3 + $0x90] sm:$0xf]
      %v617 = vld [vmem:[%s3 + $0x94] sm:$0xf]
      %v618 = vld [vmem:[%s3 + $0x98] sm:$0xf]
      %v619 = vld [vmem:[%s3 + $0x9c] sm:$0xf]
      %v620 = vld [vmem:[%s3 + $0xa0] sm:$0xf]
      %v621 = vld [vmem:[%s3 + $0xa4] sm:$0xf]
      %v622 = vld [vmem:[%s3 + $0xa8] sm:$0xf]
      %v623 = vld [vmem:[%s3 + $0xac] sm:$0xf]
      %v624 = vld [vmem:[%s3 + $0xb0] sm:$0xf]
      %v625 = vld [vmem:[%s3 + $0xb4] sm:$0xf]
      %v626 = vld [vmem:[%s3 + $0xb8] sm:$0xf]
      %v627 = vld [vmem:[%s3 + $0xbc] sm:$0xf]
      %v628 = vld [vmem:[%s4] sm:$0x1]
      %v630 = vperm.slane %v628, 0
      %v633 = vshrl.u32 %v563, 16
      %v635 = vrot.slane %v633, 3
      %v636 = vshll.u32 %v563, 16
      %v638 = vrot.slane %v636, 4
      %v639 = vor.u32 %v635, %v638
      %v641 = vshrl.u32 %v564, 16
      %v643 = vrot.slane %v641, 3
      %v644 = vshll.u32 %v564, 16
      %v646 = vrot.slane %v644, 4
      %v647 = vor.u32 %v643, %v646
      %v648 = vsel %vm314, %v639, %v647
      %v650 = vshrl.u32 %v573, 16
      %v652 = vrot.slane %v650, 3
      %v653 = vshll.u32 %v573, 16
      %v655 = vrot.slane %v653, 4
      %v656 = vor.u32 %v652, %v655
      %v657 = vsel %vm314, %v656, %v656
      %v659 = vshrl.u32 %v577, 16
      %v661 = vrot.slane %v659, 3
      %v662 = vshll.u32 %v577, 16
      %v664 = vrot.slane %v662, 4
      %v665 = vor.u32 %v661, %v664
      %v667 = vshrl.u32 %v579, 16
      %v669 = vrot.slane %v667, 3
      %v670 = vshll.u32 %v579, 16
      %v672 = vrot.slane %v670, 4
      %v673 = vor.u32 %v669, %v672
      %v674 = vsel %vm314, %v665, %v673
      %v726 = vunpack.c.l.b16 %v580
      %v727 = vunpack.c.l.b16 %v581
      %v728 = vunpack.c.l.b16 %v582
      %v729 = vunpack.c.l.b16 %v583
      %v730 = vunpack.c.l.b16 %v584
      %v731 = vunpack.c.l.b16 %v585
      %v732 = vunpack.c.l.b16 %v586
      %v733 = vunpack.c.l.b16 %v587
      %v734 = vunpack.c.l.b16 %v588
      %v735 = vunpack.c.l.b16 %v589
      %v736 = vunpack.c.l.b16 %v590
      %v737 = vunpack.c.l.b16 %v591
      %v738 = vunpack.c.l.b16 %v592
      %v739 = vunpack.c.l.b16 %v593
      %v740 = vunpack.c.l.b16 %v594
      %v741 = vunpack.c.l.b16 %v595
      %v742 = vunpack.c.l.b16 %v596
      %v743 = vunpack.c.l.b16 %v597
      %v744 = vunpack.c.l.b16 %v598
      %v745 = vunpack.c.l.b16 %v599
      %v746 = vunpack.c.l.b16 %v600
      %v747 = vunpack.c.l.b16 %v601
      %v748 = vunpack.c.l.b16 %v602
      %v749 = vunpack.c.l.b16 %v603
      %v750 = vunpack.c.l.b16 %v604
      %v751 = vunpack.c.l.b16 %v605
      %v752 = vunpack.c.l.b16 %v606
      %v753 = vunpack.c.l.b16 %v607
      %v754 = vunpack.c.l.b16 %v608
      %v755 = vunpack.c.l.b16 %v609
      %v756 = vunpack.c.l.b16 %v610
      %v757 = vunpack.c.l.b16 %v611
      %v758 = vunpack.c.l.b16 %v612
      %v759 = vunpack.c.l.b16 %v613
      %v760 = vunpack.c.l.b16 %v614
      %v761 = vunpack.c.l.b16 %v615
      %v762 = vunpack.c.l.b16 %v616
      %v763 = vunpack.c.l.b16 %v617
      %v764 = vunpack.c.l.b16 %v618
      %v765 = vunpack.c.l.b16 %v619
      %v766 = vunpack.c.l.b16 %v620
      %v767 = vunpack.c.l.b16 %v621
      %v768 = vunpack.c.l.b16 %v622
      %v769 = vunpack.c.l.b16 %v623
      %v770 = vunpack.c.l.b16 %v624
      %v771 = vunpack.c.l.b16 %v625
      %v772 = vunpack.c.l.b16 %v626
      %v773 = vunpack.c.l.b16 %v627
      %v774 = vpack.c.b16 %v727, %v726
      %v775 = vpack.c.b16 %v729, %v728
      %v776 = vpack.c.b16 %v731, %v730
      %v777 = vpack.c.b16 %v733, %v732
      %v778 = vpack.c.b16 %v735, %v734
      %v779 = vpack.c.b16 %v737, %v736
      %v780 = vpack.c.b16 %v739, %v738
      %v781 = vpack.c.b16 %v741, %v740
      %v782 = vpack.c.b16 %v743, %v742
      %v783 = vpack.c.b16 %v745, %v744
      %v784 = vpack.c.b16 %v747, %v746
      %v785 = vpack.c.b16 %v749, %v748
      %v786 = vpack.c.b16 %v751, %v750
      %v787 = vpack.c.b16 %v753, %v752
      %v788 = vpack.c.b16 %v755, %v754
      %v789 = vpack.c.b16 %v757, %v756
      %v790 = vpack.c.b16 %v759, %v758
      %v791 = vpack.c.b16 %v761, %v760
      %v792 = vpack.c.b16 %v763, %v762
      %v793 = vpack.c.b16 %v765, %v764
      %v794 = vpack.c.b16 %v767, %v766
      %v795 = vpack.c.b16 %v769, %v768
      %v796 = vpack.c.b16 %v771, %v770
      %v797 = vpack.c.b16 %v773, %v772
      %822 = vmatpush.bf16.msra.mxu0 %v781
      %823 = vmatpush.bf16.msra.mxu0 %v780
      %824 = vmatpush.bf16.msra.mxu0 %v779
      %825 = vmatpush.bf16.msra.mxu0 %v778
      %826 = vmatpush.bf16.msra.mxu0 %v777
      %827 = vmatpush.bf16.msra.mxu0 %v776
      %828 = vmatpush.bf16.msra.mxu0 %v775
      %829 = vmatpush.bf16.msra.mxu0 %v774
      %830 = vmatmul.bf16.gmra.mxu0 %v648
      %v831 = vpop.f32.mrf.mxu0
      %v832 = vadd.f32 %v630, %v831
      %v833 = vpop.f32.mrf.mxu0
      %v834 = vadd.f32 %v630, %v833
      %835 = vdwg.mxu0
      %836 = vmatpush.bf16.msra.mxu0 %v789
      %837 = vmatpush.bf16.msra.mxu0 %v788
      %838 = vmatpush.bf16.msra.mxu0 %v787
      %839 = vmatpush.bf16.msra.mxu0 %v786
      %840 = vmatpush.bf16.msra.mxu0 %v785
      %841 = vmatpush.bf16.msra.mxu0 %v784
      %842 = vmatpush.bf16.msra.mxu0 %v783
      %843 = vmatpush.bf16.msra.mxu0 %v782
      %844 = vmatmul.bf16.gmra.mxu0 %v657
      %v845 = vpop.f32.mrf.mxu0
      %v846 = vadd.f32 %v832, %v845
      %v847 = vpop.f32.mrf.mxu0
      %v848 = vadd.f32 %v834, %v847
      %849 = vdwg.mxu0
      %850 = vmatpush.bf16.msra.mxu0 %v797
      %851 = vmatpush.bf16.msra.mxu0 %v796
      %852 = vmatpush.bf16.msra.mxu0 %v795
      %853 = vmatpush.bf16.msra.mxu0 %v794
      %854 = vmatpush.bf16.msra.mxu0 %v793
      %855 = vmatpush.bf16.msra.mxu0 %v792
      %856 = vmatpush.bf16.msra.mxu0 %v791
      %857 = vmatpush.bf16.msra.mxu0 %v790
      %858 = vmatmul.bf16.gmra.mxu0 %v674
      %v859 = vpop.f32.mrf.mxu0
      %v860 = vadd.f32 %v846, %v859
      %v861 = vpop.f32.mrf.mxu0
      %v862 = vadd.f32 %v848, %v861
      %863 = vdwg.mxu0
      %v864 = vld [vmem:[%s219] sm:$0xf]
      %v865 = vld [vmem:[%s219 + $0x4] sm:$0xf]
      %v866 = vunpack.c.l.bf16 %v864
      %v867 = vunpack.c.l.bf16 %v865
      %v868 = vadd.f32 %v860, %v866
      %v869 = vadd.f32 %v862, %v867
      %v870 = vpack.c.bf16 %v868, %v868
      %v871 = vpack.c.bf16 %v869, %v869
      %872 = vst [vmem:[%s224] sm:$0xf] %v870
      %873 = vst [vmem:[%s224 + $0x4] sm:$0xf] %v871
      %p874 = scmp.lt.s32.totalorder %s16, 1
      %s875 = scalar_select %p874, %s16, 1
      %s876 = smul.addr %s875, 2
      %s877 = smul.addr %s876, 4
      %s878 = scalar_lea.vmem %s5, %s877
      // Predicated region
      $region41: #{basic_block_forward.1} parent=39 // pred_check
        %p879 = pneg %p144
      $region42: #{basic_block_forward.1} parent=39 // pred_check_branch
        %881 = sbr.rel (%p879) target = $region44
      $region43: #{basic_block_forward.1} parent=39 // pred_region
        _
      $region44: #{basic_block_forward.1} parent=39 // pred_fallthru
        _
    $region40: #{basic_block_forward.1} parent=5 // pred_fallthru
      _
    %p882 = scmp.le.s32.totalorder 2, %s11
    // Predicated region
    $region45: #{basic_block_forward.1} parent=5 // pred_check
      %p883 = pneg %p882
    $region46: #{basic_block_forward.1} parent=5 // pred_check_branch
      %885 = sbr.rel (%p883) target = $region48
    $region47: #{basic_block_forward.1} parent=5 // pred_region
      %s886 = ssub.s32 %s11, 2
      // Predicated region
      $region49: #{basic_block_forward.1} parent=47 // pred_check
        %p887 = pneg %p150
      $region50: #{basic_block_forward.1} parent=47 // pred_check_branch
        %889 = sbr.rel (%p887) target = $region52
      $region51: #{basic_block_forward.1} parent=47 // pred_region
        %p890 = scmp.lt.s32.totalorder %s17, 1
        %s891 = scalar_select %p890, %s17, 1
        %s892 = smul.addr %s891, 2
        %s893 = smul.addr %s892, 4
        %s894 = scalar_lea.vmem %s5, %s893
      $region52: #{basic_block_forward.1} parent=47 // pred_fallthru
        _
    $region48: #{basic_block_forward.1} parent=5 // pred_fallthru
      _
  $region6: #{basic_block_forward.1} parent=0 // loop_footer
    %s15 = sadd.s32 1, %s11
  $region7: #{basic_block_forward.1} parent=0 // loop_footer_branch
    %10 = sbr.rel target = $region3
  $region8: #{basic_block_forward.1} parent=0 // loop_exit
    _

</llo_original>
